<compile_context>
chip_gen: v6e
topology: v6e:2x2x1
jax: 0.10.0
libtpu: 0.0.40
codegen_flags: <defaults>
</compile_context>

<pallas_src>
import jax
import jax.numpy as jnp
from jax.experimental import pallas as pl
from jax.experimental.pallas import tpu as pltpu


_VMEM_LIMIT_BYTES = 32 * 1024 * 1024   # safe on v5e/v6e (128 MiB) and v7x (64 MiB phys)
_VMEM_ACT_BUDGET = 20 * 1024 * 1024    # budget for streamed tiles + f32 temporaries
_TB_CAP = 8192                         # review-recommended sweep upper bound


def _round_up(x, m):
    return (x + m - 1) // m * m


def _max_tile_rows(K, H_pad):
    """Largest batch tile (multiple of 1024, capped) that fits the VMEM budget."""
    k_lanes = _round_up(K, 128)
    per_row = 2 * (2 * k_lanes)        # double-buffered bf16 x tile (lane-padded)
    per_row += 2 * (4 * H_pad)         # f32 h + hh temporaries
    per_row += 2 * 4                   # double-buffered lane-dense f32 output tile
    tb = _VMEM_ACT_BUDGET // per_row
    tb = min(_TB_CAP, (tb // 1024) * 1024)
    return max(1024, tb)


def _mlp_kernel(x_ref, w1_ref, b1_ref, w2_ref, b2_ref, o_ref):
    # Layer 1: single bf16 MXU matmul (== concat([ue, me, ft]) @ W1), f32 acc.
    h = jnp.dot(x_ref[...], w1_ref[...], preferred_element_type=jnp.float32)
    h = jnp.maximum(h + b1_ref[...], 0.0)                      # (TB, H_pad) f32

    # Layer 2: output width 1 -> VPU multiply + lane (XLU) reduce against the
    # w2 row; result lands directly in the lane-dense output layout.
    # (Per review: the XLU reduce currently hides under DMA; revisit only if
    #  the bundle dump shows it saturating after the bf16/TB changes.)
    sub, lanes = o_ref.shape                                   # (TB//128, 128)
    hh = h.reshape(sub, lanes, h.shape[-1])                    # layout-trivial row split
    out = jnp.sum(hh * w2_ref[...][None, :, :], axis=-1) + b2_ref[0]
    o_ref[...] = out.astype(o_ref.dtype)


def mlp_forward(x, w1, b1, w2_row, b2, *, tb):
    """Fused Linear -> ReLU -> Linear(width 1) over a (B_pad, K) bf16 slab.

    Returns a lane-dense (B_pad // 128, 128) f32 array; flat index s*128 + l is
    batch row s*128 + l.
    """
    B_pad, K = x.shape
    H_pad = w1.shape[1]
    assert B_pad % tb == 0 and tb % 128 == 0
    # Output blocks are (tb//128, 128): either (8,128)-aligned or the full array.
    assert tb % 1024 == 0 or tb == B_pad
    G = B_pad // tb
    sub = tb // 128

    flops = 2 * B_pad * K * H_pad + 4 * B_pad * H_pad
    bytes_accessed = (x.size * x.dtype.itemsize
                      + w1.size * w1.dtype.itemsize
                      + 4 * (b1.size + w2_row.size + b2.size + B_pad))

    return pl.pallas_call(
        _mlp_kernel,
        out_shape=jax.ShapeDtypeStruct((B_pad // 128, 128), jnp.float32),
        grid_spec=pltpu.PrefetchScalarGridSpec(
            num_scalar_prefetch=0,
            grid=(G,),
            in_specs=[
                # Activation slab: streamed over the batch (double-buffered).
                pl.BlockSpec((tb, K), lambda i: (i, 0)),
                # Weights / biases: VMEM-resident across all grid steps.
                pl.BlockSpec((K, H_pad), lambda i: (0, 0)),
                pl.BlockSpec((1, H_pad), lambda i: (0, 0)),
                pl.BlockSpec((1, H_pad), lambda i: (0, 0)),
                # b2: scalar in SMEM (no wasted (8,128) VMEM tile / DMA stream).
                pl.BlockSpec(memory_space=pltpu.MemorySpace.SMEM),
            ],
            out_specs=pl.BlockSpec((sub, 128), lambda i: (i, 0)),
        ),
        compiler_params=pltpu.CompilerParams(
            dimension_semantics=("parallel",),          # megacore-shard batch on v7x
            vmem_limit_bytes=_VMEM_LIMIT_BYTES),
        cost_estimate=pl.CostEstimate(
            flops=flops, transcendentals=0, bytes_accessed=bytes_accessed),
    )(x, w1, b1, w2_row, b2)


def movie_recommendation_forward(params, user, movie, features, *, tb=None):
    B = user.shape[0]
    K, H_pad = params["w1"].shape
    emb_dtype = params["user_emb"].dtype

    tb_max = tb if tb is not None else _max_tile_rows(K, H_pad)
    if B <= tb_max:
        # Small-batch fast path: one grid step, full-array blocks.
        B_pad = max(_round_up(B, 128), 128)
        tb_eff = B_pad
    else:
        tb_eff = max(1024, (tb_max // 1024) * 1024)
        B_pad = _round_up(B, tb_eff)
    pad = B_pad - B

    # Fold batch padding into the gather/concat producer: pad only the cheap
    # index vectors and the narrow feature matrix; XLA fuses
    # gather + concat + bf16 cast into one pass over the activations, so there
    # is no extra full-activation jnp.pad round trip in HBM.
    user_p = jnp.pad(user, (0, pad)) if pad else user
    movie_p = jnp.pad(movie, (0, pad)) if pad else movie
    feat_p = jnp.pad(features, ((0, pad), (0, 0))) if pad else features
    x = jnp.concatenate(
        [params["user_emb"][user_p],
         params["movie_emb"][movie_p],
         feat_p.astype(emb_dtype)], axis=1)                    # (B_pad, 2E+F) bf16

    out = mlp_forward(x, params["w1"], params["b1"],
                      params["w2_row"], params["b2"], tb=tb_eff)
    res = out.reshape(-1)[:B]                                  # (B,)
    if B == 1:
        return res.reshape(())      # match torch .squeeze() of (1,1) -> scalar
    return res


def init_params(key, num_users, num_movies, num_features,
                embedding_dim, hidden_dim):
    """Logical (nn.Module-shaped) parameters; Linear weights stored as (in, out)."""
    k = jax.random.split(key, 6)
    in_dim = embedding_dim * 2 + num_features
    return {
        "user_emb": jax.random.normal(k[0], (num_users, embedding_dim), jnp.float32),
        "movie_emb": jax.random.normal(k[1], (num_movies, embedding_dim), jnp.float32),
        "w1": jax.random.normal(k[2], (in_dim, hidden_dim), jnp.float32)
              * (1.0 / jnp.sqrt(in_dim)),
        "b1": jax.random.normal(k[3], (hidden_dim,), jnp.float32) * 0.01,
        "w2": jax.random.normal(k[4], (hidden_dim, 1), jnp.float32)
              * (1.0 / jnp.sqrt(hidden_dim)),
        "b2": jax.random.normal(k[5], (1,), jnp.float32) * 0.01,
    }


def prepare_params(params):
    """Kernel-ready params: bf16 streamed operands, H zero-padded to a lane multiple."""
    w1 = params["w1"]
    H = w1.shape[1]
    H_pad = _round_up(H, 128)
    ph = H_pad - H
    return {
        # bf16 embedding tables: halve random-gather HBM traffic and feed the
        # bf16 activation slab without a separate cast pass.
        "user_emb": params["user_emb"].astype(jnp.bfloat16),
        "movie_emb": params["movie_emb"].astype(jnp.bfloat16),
        "w1": jnp.pad(w1, ((0, 0), (0, ph))).astype(jnp.bfloat16),
        # Post-matmul path stays f32 (bias, ReLU, layer-2 reduce).
        "b1": jnp.pad(params["b1"], (0, ph)).reshape(1, H_pad).astype(jnp.float32),
        "w2_row": jnp.pad(params["w2"].reshape(-1), (0, ph))
                  .reshape(1, H_pad).astype(jnp.float32),
        "b2": params["b2"].reshape(1,).astype(jnp.float32),
    }


if __name__ == "__main__":
    # Small shapes consistent with the module (embedding_dim / hidden_dim are
    # the nn.Module defaults).
    num_users, num_movies = 64, 128
    num_features = 8
    embedding_dim = 50
    hidden_dim = 100
    batch = 8

    key = jax.random.PRNGKey(0)
    kp, ku, km, kf = jax.random.split(key, 4)

    logical = init_params(kp, num_users, num_movies, num_features,
                          embedding_dim, hidden_dim)
    params = prepare_params(logical)

    user = jax.random.randint(ku, (batch,), 0, num_users, dtype=jnp.int32)
    movie = jax.random.randint(km, (batch,), 0, num_movies, dtype=jnp.int32)
    features = jax.random.normal(kf, (batch, num_features), jnp.float32)

    out = movie_recommendation_forward(params, user, movie, features)
    out = jax.block_until_ready(out)
    assert out.shape == (batch,)

    # Reference 1: exact f32 math of the nn.Module (loose tolerance — the
    # kernel streams bf16 operands with f32 accumulation).
    ue = logical["user_emb"][user]
    me = logical["movie_emb"][movie]
    x32 = jnp.concatenate([ue, me, features], axis=1)
    h32 = jnp.maximum(x32 @ logical["w1"] + logical["b1"][None, :], 0.0)
    ref32 = jnp.squeeze(h32 @ logical["w2"] + logical["b2"][None, :])
    assert jnp.allclose(out, ref32, atol=5e-2, rtol=5e-2), (out, ref32)

    # Reference 2: same bf16 operand rounding as the kernel (tight tolerance).
    xbf = x32.astype(jnp.bfloat16)
    hbf = jnp.maximum(
        jnp.dot(xbf, logical["w1"].astype(jnp.bfloat16),
                preferred_element_type=jnp.float32) + logical["b1"][None, :], 0.0)
    refbf = jnp.sum(hbf * logical["w2"].reshape(1, -1), axis=1) + logical["b2"][0]
    assert jnp.allclose(out, refbf, atol=2e-3, rtol=2e-3), (out, refbf)

    print("KERNEL_OK")
</pallas_src>

<mosaic_0001>
module attributes {stable_mosaic.version = 11 : i64} {
  func.func @_mlp_kernel(%arg0: i32, %arg1: memref<128x108xbf16, #tpu.memory_space<vmem>>, %arg2: memref<108x128xbf16, #tpu.memory_space<vmem>>, %arg3: memref<1x128xf32, #tpu.memory_space<vmem>>, %arg4: memref<1x128xf32, #tpu.memory_space<vmem>>, %arg5: memref<1xf32, #tpu.memory_space<smem>>, %arg6: memref<1x128xf32, #tpu.memory_space<vmem>>) attributes {dimension_semantics = [#tpu.dimension_semantics<parallel>], iteration_bounds = array<i64: 1>, scalar_prefetch = 0 : i64, scratch_operands = 0 : i64, tpu.core_type = #tpu.core_type<tc>, window_params = [{transform_indices = @transform_0, window_bounds = array<i64: 128, 108>}, {pipeline_mode = #tpu.pipeline_mode<synchronous>, transform_indices = @transform_1, window_bounds = array<i64: 108, 128>}, {pipeline_mode = #tpu.pipeline_mode<synchronous>, transform_indices = @transform_2, window_bounds = array<i64: 1, 128>}, {pipeline_mode = #tpu.pipeline_mode<synchronous>, transform_indices = @transform_3, window_bounds = array<i64: 1, 128>}, {transform_indices = @transform_4, window_bounds = array<i64: 1>}, {transform_indices = @transform_5, window_bounds = array<i64: 1, 128>}]} {
    %c0 = arith.constant 0 : index
    %c0_0 = arith.constant 0 : index
    %0 = vector.load %arg1[%c0, %c0_0] : memref<128x108xbf16, #tpu.memory_space<vmem>>, vector<128x108xbf16>
    %c0_1 = arith.constant 0 : index
    %c0_2 = arith.constant 0 : index
    %1 = vector.load %arg2[%c0_1, %c0_2] : memref<108x128xbf16, #tpu.memory_space<vmem>>, vector<108x128xbf16>
    %cst = arith.constant dense<0.000000e+00> : vector<128x128xf32>
    %2 = tpu.matmul %0, %1, %cst {dimension_numbers = #tpu.dot_dimension_numbers<[1], [0], [0], [1], [0, 0, 1, 1], [], []>} : vector<128x108xbf16>, vector<108x128xbf16>, vector<128x128xf32> -> vector<128x128xf32>
    %c0_3 = arith.constant 0 : index
    %c0_4 = arith.constant 0 : index
    %3 = vector.load %arg3[%c0_3, %c0_4] : memref<1x128xf32, #tpu.memory_space<vmem>>, vector<1x128xf32>
    %4 = vector.broadcast %3 : vector<1x128xf32> to vector<128x128xf32>
    %5 = arith.addf %2, %4 : vector<128x128xf32>
    %cst_5 = arith.constant 0.000000e+00 : f32
    %6 = vector.broadcast %cst_5 : f32 to vector<128x128xf32>
    %7 = arith.maximumf %5, %6 : vector<128x128xf32>
    %8 = vector.shape_cast %7 : vector<128x128xf32> to vector<1x128x128xf32>
    %c0_6 = arith.constant 0 : index
    %c0_7 = arith.constant 0 : index
    %9 = vector.load %arg4[%c0_6, %c0_7] : memref<1x128xf32, #tpu.memory_space<vmem>>, vector<1x128xf32>
    %10 = vector.shape_cast %9 : vector<1x128xf32> to vector<1x1x128xf32>
    %11 = vector.broadcast %10 : vector<1x1x128xf32> to vector<1x128x128xf32>
    %12 = arith.mulf %8, %11 : vector<1x128x128xf32>
    %cst_8 = arith.constant dense<0.000000e+00> : vector<1x128xf32>
    %13 = vector.multi_reduction <add>, %12, %cst_8 [2] : vector<1x128x128xf32> to vector<1x128xf32>
    %c0_9 = arith.constant 0 : index
    %14 = memref.load %arg5[%c0_9] : memref<1xf32, #tpu.memory_space<smem>>
    %15 = vector.broadcast %14 : f32 to vector<1x128xf32>
    %16 = arith.addf %13, %15 : vector<1x128xf32>
    %c0_10 = arith.constant 0 : index
    %c0_11 = arith.constant 0 : index
    %17 = vector.load %arg6[%c0_10, %c0_11] : memref<1x128xf32, #tpu.memory_space<vmem>>, vector<1x128xf32>
    tpu.vector_store %arg6[%c0_10, %c0_11], %16 {strides = array<i32>} : memref<1x128xf32, #tpu.memory_space<vmem>>, vector<1x128xf32>,
    return
  }
  func.func @transform_0(%arg0: i32) -> (i32, i32) {
    %c0_i32 = arith.constant 0 : i32
    %c0_i32_0 = arith.constant 0 : i32
    return %arg0, %c0_i32 : i32, i32
  }
  func.func @transform_1(%arg0: i32) -> (i32, i32) {
    %c0_i32 = arith.constant 0 : i32
    %c0_i32_0 = arith.constant 0 : i32
    %c0_i32_1 = arith.constant 0 : i32
    return %c0_i32, %c0_i32_0 : i32, i32
  }
  func.func @transform_2(%arg0: i32) -> (i32, i32) {
    %c0_i32 = arith.constant 0 : i32
    %c0_i32_0 = arith.constant 0 : i32
    %c0_i32_1 = arith.constant 0 : i32
    return %c0_i32, %c0_i32_0 : i32, i32
  }
  func.func @transform_3(%arg0: i32) -> (i32, i32) {
    %c0_i32 = arith.constant 0 : i32
    %c0_i32_0 = arith.constant 0 : i32
    %c0_i32_1 = arith.constant 0 : i32
    return %c0_i32, %c0_i32_0 : i32, i32
  }
  func.func @transform_4(%arg0: i32) -> i32 {
    %c0_i32 = arith.constant 0 : i32
    %c0_i32_0 = arith.constant 0 : i32
    return %c0_i32 : i32
  }
  func.func @transform_5(%arg0: i32) -> (i32, i32) {
    %c0_i32 = arith.constant 0 : i32
    %c0_i32_0 = arith.constant 0 : i32
    return %arg0, %c0_i32 : i32, i32
  }
}

</mosaic_0001>

<llo_original>
// kernel: tpu_custom_call.1
$region0: #{tpu_custom_call.1}
  #allocation0 [shape = 'u32[]', space=smem, size = 0x4, offset = 0x4, fixed_abs, tag = 'smem constant byte address 0x4 - core index']
  #allocation1 [shape = 'u32[144,128]{1,0:T(1,128)}', space=vmem, size = 0x12000, scoped, tag = 'internal scratch']
  #allocation2 [shape = 'f32[1]{0:T(128)S(6)}', space=smem, size = 0x200, scoped, tag = 'scoped memory for tpu_custom_call.1']
  %s0 = inlined_call_operand.vmem [shape: bf16[128,108], index: 0, kind: input, shape index: {}]
  %s1 = inlined_call_operand.vmem [shape: bf16[108,128], index: 1, kind: input, shape index: {}]
  %s2 = inlined_call_operand.vmem [shape: f32[1,128], index: 2, kind: input, shape index: {}]
  %s3 = inlined_call_operand.vmem [shape: f32[1,128], index: 3, kind: input, shape index: {}]
  %s4 = inlined_call_operand.<no memory space> [shape: f32[1], index: 4, kind: input, shape index: {}]
  %s5 = inlined_call_operand.hbm [shape: f32[1,128], index: 5, kind: output, shape index: {}]
  %s6 = sld [smem:[#allocation0]]
  $region30: #{tpu_custom_call.1} parent=0
    _
  %s8 = ssub.s32 1, %s6
  %s9 = scalar_select 0, %s8, %s6
  %10 = sst [smem:[#allocation2]] %s4
  $region1: #{tpu_custom_call.1} parent=0
    #allocation3 [shape = 'u8[512]{0}', space=vmem, size = 0x400, scoped, tag = 'output window, operand 0, single buffered']
    #allocation4 [shape = 's32[1]{0}', space=sflag, size = 0x4, scoped, tag = 'scoped memory for tpu_custom_call.1']
    %11 = vsyncpa [#allocation4], 0
    // Predicated region
    $region2: #{tpu_custom_call.1} parent=1 // pred_check
      _
    $region3: #{tpu_custom_call.1} parent=1 // pred_check_branch
      %13 = sbr.rel (0) target = $region5
    $region4: #{tpu_custom_call.1} parent=1 // pred_region
      _
    $region5: #{tpu_custom_call.1} parent=1 // pred_fallthru
      _
    // Predicated region
    $region6: #{tpu_custom_call.1} parent=1 // pred_check
      _
    $region7: #{tpu_custom_call.1} parent=1 // pred_check_branch
      %15 = sbr.rel (0) target = $region9
    $region8: #{tpu_custom_call.1} parent=1 // pred_region
      _
    $region9: #{tpu_custom_call.1} parent=1 // pred_fallthru
      _
    // Predicated region
    $region10: #{tpu_custom_call.1} parent=1 // pred_check
      _
    $region11: #{tpu_custom_call.1} parent=1 // pred_check_branch
      %17 = sbr.rel (0) target = $region13
    $region12: #{tpu_custom_call.1} parent=1 // pred_region
      _
    $region13: #{tpu_custom_call.1} parent=1 // pred_fallthru
      _
    // Predicated region
    $region14: #{tpu_custom_call.1} parent=1 // pred_check
      _
    $region15: #{tpu_custom_call.1} parent=1 // pred_check_branch
      %19 = sbr.rel (0) target = $region17
    $region16: #{tpu_custom_call.1} parent=1 // pred_region
      _
    $region17: #{tpu_custom_call.1} parent=1 // pred_fallthru
      _
    // Predicated region
    $region18: #{tpu_custom_call.1} parent=1 // pred_check
      _
    $region19: #{tpu_custom_call.1} parent=1 // pred_check_branch
      %21 = sbr.rel (0) target = $region21
    $region20: #{tpu_custom_call.1} parent=1 // pred_region
      _
    $region21: #{tpu_custom_call.1} parent=1 // pred_fallthru
      _
    %v23 = vld [vmem:[%s0] sm:$0xf]
    %v24 = vld [vmem:[%s0 + $0x4] sm:$0xf]
    %v25 = vld [vmem:[%s0 + $0x8] sm:$0xf]
    %v26 = vld [vmem:[%s0 + $0xc] sm:$0xf]
    %v27 = vld [vmem:[%s0 + $0x10] sm:$0xf]
    %v28 = vld [vmem:[%s0 + $0x14] sm:$0xf]
    %v29 = vld [vmem:[%s0 + $0x18] sm:$0xf]
    %v30 = vld [vmem:[%s0 + $0x1c] sm:$0xf]
    %v31 = vld [vmem:[%s0 + $0x20] sm:$0xf]
    %v32 = vld [vmem:[%s0 + $0x24] sm:$0xf]
    %v33 = vld [vmem:[%s0 + $0x28] sm:$0xf]
    %v34 = vld [vmem:[%s0 + $0x2c] sm:$0xf]
    %v35 = vld [vmem:[%s0 + $0x30] sm:$0xf]
    %v36 = vld [vmem:[%s0 + $0x34] sm:$0xf]
    %v37 = vld [vmem:[%s0 + $0x38] sm:$0xf]
    %v38 = vld [vmem:[%s0 + $0x3c] sm:$0xf]
    %v39 = vld [vmem:[%s1] sm:$0xf]
    %v40 = vld [vmem:[%s1 + $0x4] sm:$0xf]
    %v41 = vld [vmem:[%s1 + $0x8] sm:$0xf]
    %v42 = vld [vmem:[%s1 + $0xc] sm:$0xf]
    %v43 = vld [vmem:[%s1 + $0x10] sm:$0xf]
    %v44 = vld [vmem:[%s1 + $0x14] sm:$0xf]
    %v45 = vld [vmem:[%s1 + $0x18] sm:$0xf]
    %v46 = vld [vmem:[%s1 + $0x1c] sm:$0xf]
    %v47 = vld [vmem:[%s1 + $0x20] sm:$0xf]
    %v48 = vld [vmem:[%s1 + $0x24] sm:$0xf]
    %v49 = vld [vmem:[%s1 + $0x28] sm:$0xf]
    %v50 = vld [vmem:[%s1 + $0x2c] sm:$0xf]
    %v51 = vld [vmem:[%s1 + $0x30] sm:$0xf]
    %v52 = vld [vmem:[%s1 + $0x34] sm:$0x3]
    %v53 = vld [vmem:[%s2] sm:$0x1]
    %v55 = vlaneseq
    %v56 = vshrl.u32 %v55, 7
    %v57 = vsub.s32 0, %v56
    %v58 = vrot.slane %v53, %v57
    %v76 = vunpack.c.l.b16 %v23
    %v77 = vunpack.c.l.b16 %v24
    %v78 = vunpack.c.l.b16 %v25
    %v79 = vunpack.c.l.b16 %v26
    %v80 = vunpack.c.l.b16 %v27
    %v81 = vunpack.c.l.b16 %v28
    %v82 = vunpack.c.l.b16 %v29
    %v83 = vunpack.c.l.b16 %v30
    %v84 = vunpack.c.l.b16 %v31
    %v85 = vunpack.c.l.b16 %v32
    %v86 = vunpack.c.l.b16 %v33
    %v87 = vunpack.c.l.b16 %v34
    %v88 = vunpack.c.l.b16 %v35
    %v89 = vunpack.c.l.b16 %v36
    %v90 = vunpack.c.l.b16 %v37
    %v91 = vunpack.c.l.b16 %v38
    %v92 = vpack.c.b16 %v77, %v76
    %v93 = vpack.c.b16 %v79, %v78
    %v94 = vpack.c.b16 %v81, %v80
    %v95 = vpack.c.b16 %v83, %v82
    %v96 = vpack.c.b16 %v85, %v84
    %v97 = vpack.c.b16 %v87, %v86
    %v98 = vpack.c.b16 %v89, %v88
    %v99 = vpack.c.b16 %v91, %v90
    %v114 = vunpack.c.l.b16 %v39
    %v115 = vunpack.c.l.b16 %v40
    %v116 = vunpack.c.l.b16 %v41
    %v117 = vunpack.c.l.b16 %v42
    %v118 = vunpack.c.l.b16 %v43
    %v119 = vunpack.c.l.b16 %v44
    %v120 = vunpack.c.l.b16 %v45
    %v121 = vunpack.c.l.b16 %v46
    %v122 = vunpack.c.l.b16 %v47
    %v123 = vunpack.c.l.b16 %v48
    %v124 = vunpack.c.l.b16 %v49
    %v125 = vunpack.c.l.b16 %v50
    %v126 = vunpack.c.l.b16 %v51
    %v127 = vunpack.c.l.b16 %v52
    %v128 = vpack.c.b16 %v115, %v114
    %v129 = vpack.c.b16 %v117, %v116
    %v130 = vpack.c.b16 %v119, %v118
    %v131 = vpack.c.b16 %v121, %v120
    %v132 = vpack.c.b16 %v123, %v122
    %v133 = vpack.c.b16 %v125, %v124
    %v134 = vpack.c.b16 %v127, %v126
    %vm141 = vcmask 883712
    %v143 = vsel %vm141, %v92, 0
    %v146 = vsel %vm141, %v93, 0
    %v149 = vsel %vm141, %v94, 0
    %v152 = vsel %vm141, %v95, 0
    %v155 = vsel %vm141, %v96, 0
    %v158 = vsel %vm141, %v97, 0
    %v161 = vsel %vm141, %v98, 0
    %v164 = vsel %vm141, %v99, 0
    %vm166 = vcmask 1045504
    %v168 = vsel %vm166, %v134, 0
    %170 = vmatprep.subr.bf16.mxu0 0
    %171 = vmatpush1.bf16.msra.mxu0 0
    %172 = vmatprep.subr.bf16.mxu0 0
    %173 = vmatpush1.bf16.msra.mxu0 %v168
    %174 = vmatprep.subr.bf16.mxu0 0
    %175 = vmatpush1.bf16.msra.mxu0 %v133
    %176 = vmatprep.subr.bf16.mxu0 0
    %177 = vmatpush1.bf16.msra.mxu0 %v132
    %178 = vmatprep.subr.bf16.mxu0 0
    %179 = vmatpush1.bf16.msra.mxu0 %v131
    %180 = vmatprep.subr.bf16.mxu0 0
    %181 = vmatpush1.bf16.msra.mxu0 %v130
    %182 = vmatprep.subr.bf16.mxu0 0
    %183 = vmatpush1.bf16.msra.mxu0 %v129
    %184 = vmatprep.subr.bf16.mxu0 0
    %185 = vmatpush1.bf16.msra.mxu0 %v128
    %186 = vmatprep.subr.bf16.mxu0 0
    %187 = vmatpush2.bf16.msra.mxu0 0
    %188 = vmatprep.subr.bf16.mxu0 0
    %189 = vmatpush2.bf16.msra.mxu0 0
    %190 = vmatprep.subr.bf16.mxu0 0
    %191 = vmatpush2.bf16.msra.mxu0 0
    %192 = vmatprep.subr.bf16.mxu0 0
    %193 = vmatpush2.bf16.msra.mxu0 0
    %194 = vmatprep.subr.bf16.mxu0 0
    %195 = vmatpush2.bf16.msra.mxu0 0
    %196 = vmatprep.subr.bf16.mxu0 0
    %197 = vmatpush2.bf16.msra.mxu0 0
    %198 = vmatprep.subr.bf16.mxu0 0
    %199 = vmatpush2.bf16.msra.mxu0 0
    %200 = vmatprep.subr.bf16.mxu0 0
    %201 = vmatpush2.bf16.msra.mxu0 0
    %202 = vmatprep.mubr.bf16.mxu0 0
    %203 = vmatmul.mubr.bf16.gmra.mxu0 %v143
    %v204 = vpop.f32.mrf.mxu0
    %v205 = vadd.f32 %v58, %v204
    %v206 = vpop.f32.mrf.mxu0
    %v207 = vpop.f32.mrf.mxu0
    %v208 = vadd.f32 %v58, %v207
    %v209 = vpop.f32.mrf.mxu0
    %210 = vmatprep.mubr.bf16.mxu0 0
    %211 = vmatmul.mubr.bf16.gmra.mxu0 %v146
    %v212 = vpop.f32.mrf.mxu0
    %v213 = vadd.f32 %v58, %v212
    %v214 = vpop.f32.mrf.mxu0
    %v215 = vpop.f32.mrf.mxu0
    %v216 = vadd.f32 %v58, %v215
    %v217 = vpop.f32.mrf.mxu0
    %218 = vmatprep.mubr.bf16.mxu0 0
    %219 = vmatmul.mubr.bf16.gmra.mxu0 %v149
    %v220 = vpop.f32.mrf.mxu0
    %v221 = vadd.f32 %v58, %v220
    %v222 = vpop.f32.mrf.mxu0
    %v223 = vpop.f32.mrf.mxu0
    %v224 = vadd.f32 %v58, %v223
    %v225 = vpop.f32.mrf.mxu0
    %226 = vmatprep.mubr.bf16.mxu0 0
    %227 = vmatmul.mubr.bf16.gmra.mxu0 %v152
    %v228 = vpop.f32.mrf.mxu0
    %v229 = vadd.f32 %v58, %v228
    %v230 = vpop.f32.mrf.mxu0
    %v231 = vpop.f32.mrf.mxu0
    %v232 = vadd.f32 %v58, %v231
    %v233 = vpop.f32.mrf.mxu0
    %234 = vmatprep.mubr.bf16.mxu0 0
    %235 = vmatmul.mubr.bf16.gmra.mxu0 %v155
    %v236 = vpop.f32.mrf.mxu0
    %v237 = vadd.f32 %v58, %v236
    %v238 = vpop.f32.mrf.mxu0
    %v239 = vpop.f32.mrf.mxu0
    %v240 = vadd.f32 %v58, %v239
    %v241 = vpop.f32.mrf.mxu0
    %242 = vmatprep.mubr.bf16.mxu0 0
    %243 = vmatmul.mubr.bf16.gmra.mxu0 %v158
    %v244 = vpop.f32.mrf.mxu0
    %v245 = vadd.f32 %v58, %v244
    %v246 = vpop.f32.mrf.mxu0
    %v247 = vpop.f32.mrf.mxu0
    %v248 = vadd.f32 %v58, %v247
    %v249 = vpop.f32.mrf.mxu0
    %250 = vmatprep.mubr.bf16.mxu0 0
    %251 = vmatmul.mubr.bf16.gmra.mxu0 %v161
    %v252 = vpop.f32.mrf.mxu0
    %v253 = vadd.f32 %v58, %v252
    %v254 = vpop.f32.mrf.mxu0
    %v255 = vpop.f32.mrf.mxu0
    %v256 = vadd.f32 %v58, %v255
    %v257 = vpop.f32.mrf.mxu0
    %258 = vmatprep.mubr.bf16.mxu0 0
    %259 = vmatmul.mubr.bf16.gmra.mxu0 %v164
    %v260 = vpop.f32.mrf.mxu0
    %v261 = vadd.f32 %v58, %v260
    %v262 = vpop.f32.mrf.mxu0
    %v263 = vpop.f32.mrf.mxu0
    %v264 = vadd.f32 %v58, %v263
    %v265 = vpop.f32.mrf.mxu0
    %266 = vdwg.mxu0
    %v267 = vmax.f32 %v205, 0.0
    %v268 = vmax.f32 %v208, 0.0
    %v269 = vmax.f32 %v213, 0.0
    %v270 = vmax.f32 %v216, 0.0
    %v271 = vmax.f32 %v221, 0.0
    %v272 = vmax.f32 %v224, 0.0
    %v273 = vmax.f32 %v229, 0.0
    %v274 = vmax.f32 %v232, 0.0
    %v275 = vmax.f32 %v237, 0.0
    %v276 = vmax.f32 %v240, 0.0
    %v277 = vmax.f32 %v245, 0.0
    %v278 = vmax.f32 %v248, 0.0
    %v279 = vmax.f32 %v253, 0.0
    %v280 = vmax.f32 %v256, 0.0
    %v281 = vmax.f32 %v261, 0.0
    %v282 = vmax.f32 %v264, 0.0
    %v283 = vld [vmem:[%s3] sm:$0x1]
    %v285 = vlaneseq
    %v286 = vshrl.u32 %v285, 7
    %v287 = vsub.s32 0, %v286
    %v288 = vrot.slane %v283, %v287
    %v290 = vmul.f32 %v267, %v288
    %v291 = vmul.f32 %v268, %v288
    %v292 = vmul.f32 %v269, %v288
    %v293 = vmul.f32 %v270, %v288
    %v294 = vmul.f32 %v271, %v288
    %v295 = vmul.f32 %v272, %v288
    %v296 = vmul.f32 %v273, %v288
    %v297 = vmul.f32 %v274, %v288
    %v298 = vmul.f32 %v275, %v288
    %v299 = vmul.f32 %v276, %v288
    %v300 = vmul.f32 %v277, %v288
    %v301 = vmul.f32 %v278, %v288
    %v302 = vmul.f32 %v279, %v288
    %v303 = vmul.f32 %v280, %v288
    %v304 = vmul.f32 %v281, %v288
    %v305 = vmul.f32 %v282, %v288
    %306 = vadd.xlane.f32.xlu0 %v290
    %v307 = vpop.xlane.xlu0 %306
    %308 = vadd.xlane.f32.xlu0 %v291
    %v309 = vpop.xlane.xlu0 %308
    %310 = vadd.xlane.f32.xlu0 %v292
    %v311 = vpop.xlane.xlu0 %310
    %312 = vadd.xlane.f32.xlu0 %v293
    %v313 = vpop.xlane.xlu0 %312
    %314 = vadd.xlane.f32.xlu0 %v294
    %v315 = vpop.xlane.xlu0 %314
    %316 = vadd.xlane.f32.xlu0 %v295
    %v317 = vpop.xlane.xlu0 %316
    %318 = vadd.xlane.f32.xlu0 %v296
    %v319 = vpop.xlane.xlu0 %318
    %320 = vadd.xlane.f32.xlu0 %v297
    %v321 = vpop.xlane.xlu0 %320
    %322 = vadd.xlane.f32.xlu0 %v298
    %v323 = vpop.xlane.xlu0 %322
    %324 = vadd.xlane.f32.xlu0 %v299
    %v325 = vpop.xlane.xlu0 %324
    %326 = vadd.xlane.f32.xlu0 %v300
    %v327 = vpop.xlane.xlu0 %326
    %328 = vadd.xlane.f32.xlu0 %v301
    %v329 = vpop.xlane.xlu0 %328
    %330 = vadd.xlane.f32.xlu0 %v302
    %v331 = vpop.xlane.xlu0 %330
    %332 = vadd.xlane.f32.xlu0 %v303
    %v333 = vpop.xlane.xlu0 %332
    %334 = vadd.xlane.f32.xlu0 %v304
    %v335 = vpop.xlane.xlu0 %334
    %336 = vadd.xlane.f32.xlu0 %v305
    %v337 = vpop.xlane.xlu0 %336
    %s338 = sld [smem:[#allocation2]]
    %v339 = vstv %s338
    %v340 = vadd.f32 %v307, %v339
    %v341 = vadd.f32 %v309, %v339
    %v342 = vadd.f32 %v311, %v339
    %v343 = vadd.f32 %v313, %v339
    %v344 = vadd.f32 %v315, %v339
    %v345 = vadd.f32 %v317, %v339
    %v346 = vadd.f32 %v319, %v339
    %v347 = vadd.f32 %v321, %v339
    %v348 = vadd.f32 %v323, %v339
    %v349 = vadd.f32 %v325, %v339
    %v350 = vadd.f32 %v327, %v339
    %v351 = vadd.f32 %v329, %v339
    %v352 = vadd.f32 %v331, %v339
    %v353 = vadd.f32 %v333, %v339
    %v354 = vadd.f32 %v335, %v339
    %v355 = vadd.f32 %v337, %v339
    %v372 = vlaneseq
    %v373 = vand.u32 %v372, 127
    %v374 = vlaneseq
    %v375 = vshrl.u32 %v374, 7
    %v376 = vsub.s32 %v373, %v375
    %v377 = vrot.slane %v340, %v376
    %v378 = vadd.s32 %v373, 4294967288
    %v379 = vlaneseq
    %v380 = vshrl.u32 %v379, 7
    %v381 = vsub.s32 %v378, %v380
    %v382 = vrot.slane %v341, %v381
    %vm383 = vcmask 130112
    %v384 = vsel %vm383, %v382, %v377
    %v385 = vadd.s32 %v373, 4294967280
    %v386 = vlaneseq
    %v387 = vshrl.u32 %v386, 7
    %v388 = vsub.s32 %v385, %v387
    %v389 = vrot.slane %v342, %v388
    %vm390 = vcmask 195712
    %v391 = vsel %vm390, %v389, %v384
    %v392 = vadd.s32 %v373, 4294967272
    %v393 = vlaneseq
    %v394 = vshrl.u32 %v393, 7
    %v395 = vsub.s32 %v392, %v394
    %v396 = vrot.slane %v343, %v395
    %vm397 = vcmask 261312
    %v398 = vsel %vm397, %v396, %v391
    %v399 = vadd.s32 %v373, 4294967264
    %v400 = vlaneseq
    %v401 = vshrl.u32 %v400, 7
    %v402 = vsub.s32 %v399, %v401
    %v403 = vrot.slane %v344, %v402
    %vm404 = vcmask 326912
    %v405 = vsel %vm404, %v403, %v398
    %v406 = vadd.s32 %v373, 4294967256
    %v407 = vlaneseq
    %v408 = vshrl.u32 %v407, 7
    %v409 = vsub.s32 %v406, %v408
    %v410 = vrot.slane %v345, %v409
    %vm411 = vcmask 392512
    %v412 = vsel %vm411, %v410, %v405
    %v413 = vadd.s32 %v373, 4294967248
    %v414 = vlaneseq
    %v415 = vshrl.u32 %v414, 7
    %v416 = vsub.s32 %v413, %v415
    %v417 = vrot.slane %v346, %v416
    %vm418 = vcmask 458112
    %v419 = vsel %vm418, %v417, %v412
    %v420 = vadd.s32 %v373, 4294967240
    %v421 = vlaneseq
    %v422 = vshrl.u32 %v421, 7
    %v423 = vsub.s32 %v420, %v422
    %v424 = vrot.slane %v347, %v423
    %vm425 = vcmask 523712
    %v426 = vsel %vm425, %v424, %v419
    %v427 = vadd.s32 %v373, 4294967232
    %v428 = vlaneseq
    %v429 = vshrl.u32 %v428, 7
    %v430 = vsub.s32 %v427, %v429
    %v431 = vrot.slane %v348, %v430
    %vm432 = vcmask 589312
    %v433 = vsel %vm432, %v431, %v426
    %v434 = vadd.s32 %v373, 4294967224
    %v435 = vlaneseq
    %v436 = vshrl.u32 %v435, 7
    %v437 = vsub.s32 %v434, %v436
    %v438 = vrot.slane %v349, %v437
    %vm439 = vcmask 654912
    %v440 = vsel %vm439, %v438, %v433
    %v441 = vadd.s32 %v373, 4294967216
    %v442 = vlaneseq
    %v443 = vshrl.u32 %v442, 7
    %v444 = vsub.s32 %v441, %v443
    %v445 = vrot.slane %v350, %v444
    %vm446 = vcmask 720512
    %v447 = vsel %vm446, %v445, %v440
    %v448 = vadd.s32 %v373, 4294967208
    %v449 = vlaneseq
    %v450 = vshrl.u32 %v449, 7
    %v451 = vsub.s32 %v448, %v450
    %v452 = vrot.slane %v351, %v451
    %vm453 = vcmask 786112
    %v454 = vsel %vm453, %v452, %v447
    %v455 = vadd.s32 %v373, 4294967200
    %v456 = vlaneseq
    %v457 = vshrl.u32 %v456, 7
    %v458 = vsub.s32 %v455, %v457
    %v459 = vrot.slane %v352, %v458
    %vm460 = vcmask 851712
    %v461 = vsel %vm460, %v459, %v454
    %v462 = vadd.s32 %v373, 4294967192
    %v463 = vlaneseq
    %v464 = vshrl.u32 %v463, 7
    %v465 = vsub.s32 %v462, %v464
    %v466 = vrot.slane %v353, %v465
    %vm467 = vcmask 917312
    %v468 = vsel %vm467, %v466, %v461
    %v469 = vadd.s32 %v373, 4294967184
    %v470 = vlaneseq
    %v471 = vshrl.u32 %v470, 7
    %v472 = vsub.s32 %v469, %v471
    %v473 = vrot.slane %v354, %v472
    %vm474 = vcmask 982912
    %v475 = vsel %vm474, %v473, %v468
    %v476 = vadd.s32 %v373, 4294967176
    %v477 = vlaneseq
    %v478 = vshrl.u32 %v477, 7
    %v479 = vsub.s32 %v476, %v478
    %v480 = vrot.slane %v355, %v479
    %vm481 = vcmask 1048512
    %v482 = vsel %vm481, %v480, %v475
    %484 = vst [vmem:[#allocation3] sm:$0x1] %v482
    // Predicated region
    $region22: #{tpu_custom_call.1} parent=1 // pred_check
      _
    $region23: #{tpu_custom_call.1} parent=1 // pred_check_branch
      %486 = sbr.rel (0) target = $region25
    $region24: #{tpu_custom_call.1} parent=1 // pred_region
      %s488 = ssub.s32 16, 16
      %489 = vsyncadd [#allocation4], %s488
      %s491 = sshll.u32 [#allocation3], 4
      %s492 = int_to_ptr.vmem [resolvable:$true] %s491
      %494 = dma.vmem_to_hbm [thread:$0]  %s492, 16, %s5, [#allocation4]
    $region25: #{tpu_custom_call.1} parent=1 // pred_fallthru
      _
    // Predicated region
    $region26: #{tpu_custom_call.1} parent=1 // pred_check
      _
    $region27: #{tpu_custom_call.1} parent=1 // pred_check_branch
      %496 = sbr.rel (0) target = $region29
    $region28: #{tpu_custom_call.1} parent=1 // pred_region
      %497 = dma.done [#allocation4], 16
    $region29: #{tpu_custom_call.1} parent=1 // pred_fallthru
      _
    %498 = vsyncpa [#allocation4], 1

</llo_original>
